<compile_context>
chip_gen: v7x
topology: tpu7x:2x2x1
jax: 0.10.0
libtpu: 0.0.40
codegen_flags: <defaults>
</compile_context>

<pallas_src>
import functools
import math

import jax
import jax.numpy as jnp
from jax import lax
from jax.experimental import pallas as pl
from jax.experimental.pallas import tpu as pltpu

# Large finite negative instead of -inf: avoids NaN from (-inf) - (-inf) in the
# online-softmax recurrence while still underflowing exp() to exactly 0.
_MASK = -0.7 * float(jnp.finfo(jnp.float32).max)


def _invariant_spec(shape, single_buffer):
    """BlockSpec for a grid-invariant (weight) operand resident in VMEM."""
    index_map = lambda *_: (0,) * len(shape)
    if single_buffer:
        # Weights are fetched once; no need for a second pipeline buffer.
        return pl.BlockSpec(shape, index_map, pipeline_mode=pl.Buffered(1))
    return pl.BlockSpec(shape, index_map)


def _vmem_budget_bytes():
    """Generation-aware VMEM limit (leave headroom for compiler scratch)."""
    cap = 128 * 1024 * 1024
    try:
        info = pltpu.get_tpu_info()
        cap = int(getattr(info, "vmem_capacity_bytes", cap))
    except Exception:
        cap = 64 * 1024 * 1024            # conservative (v7x-sized) fallback
    return min(int(cap * 3 // 4), 100 * 1024 * 1024)


def _pick_tile(n, target):
    """Largest tile <= target that divides n and satisfies the (8,.) sublane rule."""
    if n <= target:
        return n                          # full dim is always a legal block dim
    start = target - (target % 8)
    for t in range(start, 7, -8):
        if n % t == 0:
            return t
    # TODO(synk): pad the sequence to a tile multiple instead of erroring.
    raise ValueError(
        f"sequence length {n} has no tile that is a multiple of 8 and <= {target}")


# --------------------------------------------------------------------------- #
# Pass 1: c_kv = LayerNorm(x @ W_dkv^T).  Emits f32 (module output / kv cache)
#         plus a bf16 copy for the attention pass.  Nothing else materialized.
# --------------------------------------------------------------------------- #
def _proj_kernel(x_ref, wdkv_ref, lnw_ref, lnb_ref, ckv_ref, ckvb_ref, *, ln_eps):
    x = x_ref[0]                                                     # (TS, D) bf16
    c = jnp.dot(x, wdkv_ref[...], preferred_element_type=jnp.float32)  # (TS, L) f32
    mean = jnp.mean(c, axis=-1, keepdims=True)
    var = jnp.mean(jnp.square(c - mean), axis=-1, keepdims=True)
    c_kv = (c - mean) * lax.rsqrt(var + ln_eps)
    c_kv = c_kv * lnw_ref[...] + lnb_ref[...]
    ckv_ref[0] = c_kv.astype(ckv_ref.dtype)
    ckvb_ref[0] = c_kv.astype(ckvb_ref.dtype)


# --------------------------------------------------------------------------- #
# Pass 2: fully-absorbed flash attention over the latent c_kv with fused
#         per-head W_uv up-projection and W_o output projection.
# --------------------------------------------------------------------------- #
def _attn_kernel(past_ref, x_ref, ckv_ref, absk_ref, wuv_ref, wo_ref, out_ref,
                 qa_sc, m_sc, l_sc, acc_sc, *, n_heads, dh, tq, tk):
    qi = pl.program_id(1)
    ki = pl.program_id(2)
    past = past_ref[0]                    # dynamic scalar (no recompile per step)

    @pl.when(ki == 0)
    def _init():
        m_sc[...] = jnp.full_like(m_sc, _MASK)
        l_sc[...] = jnp.zeros_like(l_sc)
        acc_sc[...] = jnp.zeros_like(acc_sc)
        # Absorbed query projection, once per q tile (1/sqrt(dh) already folded
        # into absk in the wrapper).
        q = x_ref[0]                                                 # (TQ, D) bf16
        for h in range(n_heads):
            qa = jnp.dot(q[:, h * dh:(h + 1) * dh], absk_ref[h],
                         preferred_element_type=jnp.float32)         # (TQ, L)
            qa_sc[h] = qa.astype(qa_sc.dtype)

    # Skip KV tiles that lie entirely above the causal diagonal.
    run = (ki * tk) <= (qi * tq + (tq - 1)) + past

    @pl.when(run)
    def _update():
        ckv = ckv_ref[0]                                             # (TK, L) bf16
        latent = ckv.shape[-1]
        qa2 = qa_sc[...].reshape(n_heads * tq, latent)               # (H*TQ, L) bf16
        # scores contract over the latent dim (A @ B^T form).
        s = lax.dot_general(qa2, ckv, (((1,), (1,)), ((), ())),
                            preferred_element_type=jnp.float32)      # (H*TQ, TK)
        s = s.reshape(n_heads, tq, tk)

        # Cheap causal mask: constant intra-tile (k - q) pattern vs. a scalar
        # threshold (no-op select on fully-unmasked interior tiles).
        diff = (lax.broadcasted_iota(jnp.int32, (1, tq, tk), 2)
                - lax.broadcasted_iota(jnp.int32, (1, tq, tk), 1))
        thresh = qi * tq - ki * tk + past
        s = jnp.where(diff <= thresh, s, _MASK)

        # Online softmax update (f32 state).
        m_prev = m_sc[...]                                           # (H, TQ, 1)
        m_new = jnp.maximum(m_prev, jnp.max(s, axis=-1, keepdims=True))
        alpha = jnp.exp(m_prev - m_new)
        p = jnp.exp(s - m_new)                                       # (H, TQ, TK) f32
        l_sc[...] = alpha * l_sc[...] + jnp.sum(p, axis=-1, keepdims=True)
        pv = jnp.dot(p.astype(ckv.dtype).reshape(n_heads * tq, tk), ckv,
                     preferred_element_type=jnp.float32)             # (H*TQ, L)
        acc_sc[...] = alpha * acc_sc[...] + pv.reshape(n_heads, tq, latent)
        m_sc[...] = m_new

    @pl.when(ki == pl.num_programs(2) - 1)
    def _finalize():
        # ctx in latent space -> per-head up-project (W_uv) -> output proj (W_o),
        # accumulated straight into a lane-dense (TQ, D) slab (no head relayout).
        ctx_lat = acc_sc[...] * pl.reciprocal(l_sc[...], approx=True)  # (H,TQ,L)
        d_model = out_ref.shape[-1]
        out = jnp.zeros((tq, d_model), jnp.float32)
        for h in range(n_heads):
            ctx_h = jnp.dot(ctx_lat[h].astype(jnp.bfloat16), wuv_ref[h],
                            preferred_element_type=jnp.float32)        # (TQ, dh)
            out = out + jnp.dot(ctx_h.astype(jnp.bfloat16), wo_ref[h],
                                preferred_element_type=jnp.float32)    # (TQ, D)
        out_ref[0] = out.astype(out_ref.dtype)


def _forward(x, params, *, n_heads, past_length, ln_eps, q_seq_tile, kv_seq_tile,
             single_buffer_weights):
    B, S, D = x.shape
    if D % n_heads != 0:
        raise ValueError(f"d_model={D} must be divisible by n_heads={n_heads}")
    dh = D // n_heads
    L = params["W_dkv"].shape[0]

    budget = _vmem_budget_bytes()
    # Larger q tiles amortize c_kv re-reads (attention pass is HBM-bound at
    # small tq); KV tile kept MXU-sized.  Override via q_seq_tile/kv_seq_tile.
    tq = _pick_tile(S, q_seq_tile or (256 if budget >= 64 * 1024 * 1024 else 128))
    tk = _pick_tile(S, kv_seq_tile or 128)
    assert S % tq == 0 and S % tk == 0

    # Parameter-only precompute (the module's cached `absorbed_k` buffer);
    # the 1/sqrt(dh) score scale is folded in here.
    absorbed = jnp.matmul(params["W_q"], params["W_uk"]) / math.sqrt(dh)   # (D, L)
    absk = absorbed.reshape(n_heads, dh, L).astype(jnp.bfloat16)           # (H,dh,L)
    wuv_h = params["W_uv"].reshape(n_heads, dh, L).transpose(0, 2, 1).astype(
        jnp.bfloat16)                                                      # (H,L,dh)
    wo_h = params["W_o"].T.reshape(n_heads, dh, D).astype(jnp.bfloat16)    # (H,dh,D)
    wdkv_t = params["W_dkv"].T.astype(jnp.bfloat16)                        # (D, L)
    ln_w = params["ln_w"].reshape(1, L).astype(jnp.float32)
    ln_b = params["ln_b"].reshape(1, L).astype(jnp.float32)

    x_b = x.astype(jnp.bfloat16)                 # halve x read bandwidth (LN is f32)
    past = jnp.full((1,), past_length, dtype=jnp.int32)

    # ---------------- pass 1: LayerNorm latent projection -------------------
    proj = functools.partial(_proj_kernel, ln_eps=ln_eps)
    c_kv, c_kv_b = pl.pallas_call(
        proj,
        out_shape=(
            jax.ShapeDtypeStruct((B, S, L), x.dtype),
            jax.ShapeDtypeStruct((B, S, L), jnp.bfloat16),
        ),
        grid_spec=pltpu.PrefetchScalarGridSpec(
            num_scalar_prefetch=0,
            grid=(B, S // tq),
            in_specs=[
                pl.BlockSpec((1, tq, D), lambda b, s: (b, s, 0)),        # x (bf16)
                _invariant_spec((D, L), single_buffer_weights),          # W_dkv^T
                _invariant_spec((1, L), single_buffer_weights),          # ln weight
                _invariant_spec((1, L), single_buffer_weights),          # ln bias
            ],
            out_specs=[
                pl.BlockSpec((1, tq, L), lambda b, s: (b, s, 0)),        # c_kv f32
                pl.BlockSpec((1, tq, L), lambda b, s: (b, s, 0)),        # c_kv bf16
            ],
        ),
        compiler_params=pltpu.CompilerParams(
            dimension_semantics=("parallel", "parallel"),
            vmem_limit_bytes=budget),
    )(x_b, wdkv_t, ln_w, ln_b)

    # ---------------- pass 2: absorbed flash attention + output proj --------
    # TODO(synk): kv_cache concatenation path (decode with a growing latent
    # cache) is not wired up here; S_full == S as in the kv_cache=None case.
    attn = functools.partial(_attn_kernel, n_heads=n_heads, dh=dh, tq=tq, tk=tk)
    out = pl.pallas_call(
        attn,
        out_shape=jax.ShapeDtypeStruct((B, S, D), x.dtype),
        grid_spec=pltpu.PrefetchScalarGridSpec(
            num_scalar_prefetch=1,                                     # past_length
            grid=(B, S // tq, S // tk),
            in_specs=[
                pl.BlockSpec((1, tq, D), lambda b, qi, ki, p: (b, qi, 0)),  # x (q src)
                pl.BlockSpec((1, tk, L), lambda b, qi, ki, p: (b, ki, 0)),  # c_kv bf16
                _invariant_spec((n_heads, dh, L), single_buffer_weights),   # absorbed/sqrt(dh)
                _invariant_spec((n_heads, L, dh), single_buffer_weights),   # W_uv per head
                _invariant_spec((n_heads, dh, D), single_buffer_weights),   # W_o per head
            ],
            out_specs=pl.BlockSpec((1, tq, D), lambda b, qi, ki, p: (b, qi, 0)),
            scratch_shapes=[
                pltpu.VMEM((n_heads, tq, L), jnp.bfloat16),   # qa (absorbed q)
                pltpu.VMEM((n_heads, tq, 1), jnp.float32),    # m
                pltpu.VMEM((n_heads, tq, 1), jnp.float32),    # l
                pltpu.VMEM((n_heads, tq, L), jnp.float32),    # acc (latent ctx)
            ],
        ),
        compiler_params=pltpu.CompilerParams(
            dimension_semantics=("parallel", "parallel", "arbitrary"),
            vmem_limit_bytes=budget),
    )(past, x_b, c_kv_b, absk, wuv_h, wo_h)

    return out, c_kv


def ropeless_mla_forward(x, params, *, n_heads, past_length=0, ln_eps=1e-5,
                         q_seq_tile=None, kv_seq_tile=None,
                         single_buffer_weights=True):
    """x: (B, S, D) float32.  Returns (out (B,S,D), c_kv (B,S,L))."""
    if isinstance(past_length, int) and past_length < 0:
        # Negative offsets can fully mask rows, which breaks online softmax.
        raise ValueError("past_length must be >= 0")
    kwargs = dict(n_heads=n_heads, past_length=past_length, ln_eps=ln_eps,
                  q_seq_tile=q_seq_tile, kv_seq_tile=kv_seq_tile)
    if single_buffer_weights:
        try:
            return _forward(x, params, single_buffer_weights=True, **kwargs)
        except Exception:
            # Fallback if the toolchain rejects single-buffered invariant
            # weights (pl.Buffered(1)); correctness is unaffected.
            pass
    return _forward(x, params, single_buffer_weights=False, **kwargs)


# --------------------------------------------------------------------------- #
# Pure-JAX (f32) replica of the intended PyTorch forward, for verification.
# --------------------------------------------------------------------------- #
def _reference_forward(x, params, *, n_heads, past_length=0, ln_eps=1e-5):
    B, S, D = x.shape
    dh = D // n_heads
    W_q, W_dkv, W_uk, W_uv, W_o, ln_w, ln_b = (
        params["W_q"], params["W_dkv"], params["W_uk"], params["W_uv"],
        params["W_o"], params["ln_w"], params["ln_b"])
    absorbed = jnp.matmul(W_q, W_uk).reshape(n_heads, dh, -1)
    c = x @ W_dkv.T
    mean = c.mean(-1, keepdims=True)
    var = ((c - mean) ** 2).mean(-1, keepdims=True)
    c_kv = (c - mean) / jnp.sqrt(var + ln_eps) * ln_w + ln_b
    S_full = S
    v = (c_kv @ W_uv.T).reshape(B, S_full, n_heads, dh).transpose(0, 2, 1, 3)
    q = x.reshape(B, S, n_heads, dh)
    scores = jnp.einsum("bshd,hdl,btl->bhst", q, absorbed, c_kv) / math.sqrt(dh)
    mask = jnp.tril(jnp.ones((S, S_full)), k=past_length)
    scores = jnp.where(mask[None, None] == 0, -jnp.inf, scores)
    w = jax.nn.softmax(scores, axis=-1)
    ctx = jnp.einsum("bhst,bhtd->bshd", w, v).reshape(B, S, D)
    return ctx @ W_o.T, c_kv


def init_params(key, d_model, n_heads, kv_latent_dim):
    ks = jax.random.split(key, 5)
    s = 0.05
    return {
        "W_q":   s * jax.random.normal(ks[0], (d_model, d_model), jnp.float32),
        "W_dkv": s * jax.random.normal(ks[1], (kv_latent_dim, d_model), jnp.float32),
        "W_uk":  s * jax.random.normal(ks[2], (d_model, kv_latent_dim), jnp.float32),
        "W_uv":  s * jax.random.normal(ks[3], (d_model, kv_latent_dim), jnp.float32),
        "W_o":   s * jax.random.normal(ks[4], (d_model, d_model), jnp.float32),
        "ln_w":  jnp.ones((kv_latent_dim,), jnp.float32),
        "ln_b":  jnp.zeros((kv_latent_dim,), jnp.float32),
    }


if __name__ == "__main__":
    B, S = 2, 8
    d_model, n_heads, kv_latent_dim = 32, 4, 16

    key = jax.random.PRNGKey(0)
    kx, kp = jax.random.split(key)
    x = jax.random.normal(kx, (B, S, d_model), jnp.float32)
    params = init_params(kp, d_model, n_heads, kv_latent_dim)

    for past_length in (0, 2):
        out, c_kv = ropeless_mla_forward(x, params, n_heads=n_heads,
                                         past_length=past_length)
        jax.block_until_ready(out)
        jax.block_until_ready(c_kv)

        out_ref, c_kv_ref = _reference_forward(x, params, n_heads=n_heads,
                                               past_length=past_length)
        assert out.shape == (B, S, d_model)
        assert c_kv.shape == (B, S, kv_latent_dim)
        # bf16 matmul operands (f32 accumulate) -> tolerances vs. the f32 ref.
        assert jnp.allclose(c_kv, c_kv_ref, rtol=2e-2, atol=2e-2)
        assert jnp.allclose(out, out_ref, rtol=2e-2, atol=2e-2)

    print("KERNEL_OK")
</pallas_src>

<mosaic_0001>
module attributes {stable_mosaic.version = 11 : i64} {
  func.func @_proj_kernel(%arg0: i32, %arg1: i32, %arg2: memref<1x8x32xbf16, #tpu.memory_space<vmem>>, %arg3: memref<32x16xbf16, #tpu.memory_space<vmem>>, %arg4: memref<1x16xf32, #tpu.memory_space<vmem>>, %arg5: memref<1x16xf32, #tpu.memory_space<vmem>>, %arg6: memref<1x8x16xf32, #tpu.memory_space<vmem>>, %arg7: memref<1x8x16xbf16, #tpu.memory_space<vmem>>) attributes {dimension_semantics = [#tpu.dimension_semantics<parallel>, #tpu.dimension_semantics<parallel>], iteration_bounds = array<i64: 2, 1>, scalar_prefetch = 0 : i64, scratch_operands = 0 : i64, tpu.core_type = #tpu.core_type<tc>, window_params = [{transform_indices = @transform_0, window_bounds = array<i64: 1, 8, 32>}, {pipeline_mode = #tpu.pipeline_mode<synchronous>, transform_indices = @transform_1, window_bounds = array<i64: 32, 16>}, {pipeline_mode = #tpu.pipeline_mode<synchronous>, transform_indices = @transform_2, window_bounds = array<i64: 1, 16>}, {pipeline_mode = #tpu.pipeline_mode<synchronous>, transform_indices = @transform_3, window_bounds = array<i64: 1, 16>}, {transform_indices = @transform_4, window_bounds = array<i64: 1, 8, 16>}, {transform_indices = @transform_5, window_bounds = array<i64: 1, 8, 16>}]} {
    %c0 = arith.constant 0 : index
    %c0_0 = arith.constant 0 : index
    %c0_1 = arith.constant 0 : index
    %0 = vector.load %arg2[%c0, %c0_0, %c0_1] : memref<1x8x32xbf16, #tpu.memory_space<vmem>>, vector<1x8x32xbf16>
    %1 = vector.shape_cast %0 : vector<1x8x32xbf16> to vector<8x32xbf16>
    %c0_2 = arith.constant 0 : index
    %c0_3 = arith.constant 0 : index
    %2 = vector.load %arg3[%c0_2, %c0_3] : memref<32x16xbf16, #tpu.memory_space<vmem>>, vector<32x16xbf16>
    %cst = arith.constant dense<0.000000e+00> : vector<8x16xf32>
    %3 = tpu.matmul %1, %2, %cst {dimension_numbers = #tpu.dot_dimension_numbers<[1], [0], [0], [1], [0, 0, 1, 1], [], []>} : vector<8x32xbf16>, vector<32x16xbf16>, vector<8x16xf32> -> vector<8x16xf32>
    %cst_4 = arith.constant dense<0.000000e+00> : vector<8xf32>
    %4 = vector.multi_reduction <add>, %3, %cst_4 [1] : vector<8x16xf32> to vector<8xf32>
    %5 = vector.shape_cast %4 : vector<8xf32> to vector<8x1xf32>
    %cst_5 = arith.constant 1.600000e+01 : f32
    %6 = vector.broadcast %cst_5 : f32 to vector<8x1xf32>
    %7 = arith.divf %5, %6 : vector<8x1xf32>
    %8 = vector.broadcast %7 : vector<8x1xf32> to vector<8x16xf32>
    %9 = arith.subf %3, %8 : vector<8x16xf32>
    %10 = arith.mulf %9, %9 : vector<8x16xf32>
    %cst_6 = arith.constant dense<0.000000e+00> : vector<8xf32>
    %11 = vector.multi_reduction <add>, %10, %cst_6 [1] : vector<8x16xf32> to vector<8xf32>
    %12 = vector.shape_cast %11 : vector<8xf32> to vector<8x1xf32>
    %cst_7 = arith.constant 1.600000e+01 : f32
    %13 = vector.broadcast %cst_7 : f32 to vector<8x1xf32>
    %14 = arith.divf %12, %13 : vector<8x1xf32>
    %15 = vector.broadcast %7 : vector<8x1xf32> to vector<8x16xf32>
    %16 = arith.subf %3, %15 : vector<8x16xf32>
    %cst_8 = arith.constant 9.99999974E-6 : f32
    %17 = vector.broadcast %cst_8 : f32 to vector<8x1xf32>
    %18 = arith.addf %14, %17 : vector<8x1xf32>
    %19 = math.rsqrt %18 : vector<8x1xf32>
    %20 = vector.broadcast %19 : vector<8x1xf32> to vector<8x16xf32>
    %21 = arith.mulf %16, %20 : vector<8x16xf32>
    %c0_9 = arith.constant 0 : index
    %c0_10 = arith.constant 0 : index
    %22 = vector.load %arg4[%c0_9, %c0_10] : memref<1x16xf32, #tpu.memory_space<vmem>>, vector<1x16xf32>
    %23 = vector.broadcast %22 : vector<1x16xf32> to vector<8x16xf32>
    %24 = arith.mulf %21, %23 : vector<8x16xf32>
    %c0_11 = arith.constant 0 : index
    %c0_12 = arith.constant 0 : index
    %25 = vector.load %arg5[%c0_11, %c0_12] : memref<1x16xf32, #tpu.memory_space<vmem>>, vector<1x16xf32>
    %26 = vector.broadcast %25 : vector<1x16xf32> to vector<8x16xf32>
    %27 = arith.addf %24, %26 : vector<8x16xf32>
    %c0_13 = arith.constant 0 : index
    %c0_14 = arith.constant 0 : index
    %c0_15 = arith.constant 0 : index
    %28 = vector.load %arg6[%c0_13, %c0_14, %c0_15] : memref<1x8x16xf32, #tpu.memory_space<vmem>>, vector<1x8x16xf32>
    %29 = vector.shape_cast %28 : vector<1x8x16xf32> to vector<8x16xf32>
    %30 = vector.shape_cast %27 : vector<8x16xf32> to vector<1x8x16xf32>
    tpu.vector_store %arg6[%c0_13, %c0_14, %c0_15], %30 {strides = array<i32>} : memref<1x8x16xf32, #tpu.memory_space<vmem>>, vector<1x8x16xf32>,
    %31 = arith.truncf %27 : vector<8x16xf32> to vector<8x16xbf16>
    %c0_16 = arith.constant 0 : index
    %c0_17 = arith.constant 0 : index
    %c0_18 = arith.constant 0 : index
    %32 = vector.load %arg7[%c0_16, %c0_17, %c0_18] : memref<1x8x16xbf16, #tpu.memory_space<vmem>>, vector<1x8x16xbf16>
    %33 = vector.shape_cast %32 : vector<1x8x16xbf16> to vector<8x16xbf16>
    %34 = vector.shape_cast %31 : vector<8x16xbf16> to vector<1x8x16xbf16>
    tpu.vector_store %arg7[%c0_16, %c0_17, %c0_18], %34 {strides = array<i32>} : memref<1x8x16xbf16, #tpu.memory_space<vmem>>, vector<1x8x16xbf16>,
    return
  }
  func.func @transform_0(%arg0: i32, %arg1: i32) -> (i32, i32, i32) {
    %c0_i32 = arith.constant 0 : i32
    %c0_i32_0 = arith.constant 0 : i32
    return %arg0, %arg1, %c0_i32 : i32, i32, i32
  }
  func.func @transform_1(%arg0: i32, %arg1: i32) -> (i32, i32) {
    %c0_i32 = arith.constant 0 : i32
    %c0_i32_0 = arith.constant 0 : i32
    %c0_i32_1 = arith.constant 0 : i32
    return %c0_i32, %c0_i32_0 : i32, i32
  }
  func.func @transform_2(%arg0: i32, %arg1: i32) -> (i32, i32) {
    %c0_i32 = arith.constant 0 : i32
    %c0_i32_0 = arith.constant 0 : i32
    %c0_i32_1 = arith.constant 0 : i32
    return %c0_i32, %c0_i32_0 : i32, i32
  }
  func.func @transform_3(%arg0: i32, %arg1: i32) -> (i32, i32) {
    %c0_i32 = arith.constant 0 : i32
    %c0_i32_0 = arith.constant 0 : i32
    %c0_i32_1 = arith.constant 0 : i32
    return %c0_i32, %c0_i32_0 : i32, i32
  }
  func.func @transform_4(%arg0: i32, %arg1: i32) -> (i32, i32, i32) {
    %c0_i32 = arith.constant 0 : i32
    %c0_i32_0 = arith.constant 0 : i32
    return %arg0, %arg1, %c0_i32 : i32, i32, i32
  }
  func.func @transform_5(%arg0: i32, %arg1: i32) -> (i32, i32, i32) {
    %c0_i32 = arith.constant 0 : i32
    %c0_i32_0 = arith.constant 0 : i32
    return %arg0, %arg1, %c0_i32 : i32, i32, i32
  }
}

module attributes {stable_mosaic.version = 11 : i64} {
  func.func @_proj_kernel(%arg0: i32, %arg1: i32, %arg2: memref<1x8x32xbf16, #tpu.memory_space<vmem>>, %arg3: memref<32x16xbf16, #tpu.memory_space<vmem>>, %arg4: memref<1x16xf32, #tpu.memory_space<vmem>>, %arg5: memref<1x16xf32, #tpu.memory_space<vmem>>, %arg6: memref<1x8x16xf32, #tpu.memory_space<vmem>>, %arg7: memref<1x8x16xbf16, #tpu.memory_space<vmem>>) attributes {dimension_semantics = [#tpu.dimension_semantics<parallel>, #tpu.dimension_semantics<parallel>], iteration_bounds = array<i64: 2, 1>, scalar_prefetch = 0 : i64, scratch_operands = 0 : i64, tpu.core_type = #tpu.core_type<tc>, window_params = [{transform_indices = @transform_0, window_bounds = array<i64: 1, 8, 32>}, {pipeline_mode = #tpu.pipeline_mode<synchronous>, transform_indices = @transform_1, window_bounds = array<i64: 32, 16>}, {pipeline_mode = #tpu.pipeline_mode<synchronous>, transform_indices = @transform_2, window_bounds = array<i64: 1, 16>}, {pipeline_mode = #tpu.pipeline_mode<synchronous>, transform_indices = @transform_3, window_bounds = array<i64: 1, 16>}, {transform_indices = @transform_4, window_bounds = array<i64: 1, 8, 16>}, {transform_indices = @transform_5, window_bounds = array<i64: 1, 8, 16>}]} {
    %c0 = arith.constant 0 : index
    %c0_0 = arith.constant 0 : index
    %c0_1 = arith.constant 0 : index
    %0 = vector.load %arg2[%c0, %c0_0, %c0_1] : memref<1x8x32xbf16, #tpu.memory_space<vmem>>, vector<1x8x32xbf16>
    %1 = vector.shape_cast %0 : vector<1x8x32xbf16> to vector<8x32xbf16>
    %c0_2 = arith.constant 0 : index
    %c0_3 = arith.constant 0 : index
    %2 = vector.load %arg3[%c0_2, %c0_3] : memref<32x16xbf16, #tpu.memory_space<vmem>>, vector<32x16xbf16>
    %cst = arith.constant dense<0.000000e+00> : vector<8x16xf32>
    %3 = tpu.matmul %1, %2, %cst {dimension_numbers = #tpu.dot_dimension_numbers<[1], [0], [0], [1], [0, 0, 1, 1], [], []>} : vector<8x32xbf16>, vector<32x16xbf16>, vector<8x16xf32> -> vector<8x16xf32>
    %cst_4 = arith.constant dense<0.000000e+00> : vector<8xf32>
    %4 = vector.multi_reduction <add>, %3, %cst_4 [1] : vector<8x16xf32> to vector<8xf32>
    %5 = vector.shape_cast %4 : vector<8xf32> to vector<8x1xf32>
    %cst_5 = arith.constant 1.600000e+01 : f32
    %6 = vector.broadcast %cst_5 : f32 to vector<8x1xf32>
    %7 = arith.divf %5, %6 : vector<8x1xf32>
    %8 = vector.broadcast %7 : vector<8x1xf32> to vector<8x16xf32>
    %9 = arith.subf %3, %8 : vector<8x16xf32>
    %10 = arith.mulf %9, %9 : vector<8x16xf32>
    %cst_6 = arith.constant dense<0.000000e+00> : vector<8xf32>
    %11 = vector.multi_reduction <add>, %10, %cst_6 [1] : vector<8x16xf32> to vector<8xf32>
    %12 = vector.shape_cast %11 : vector<8xf32> to vector<8x1xf32>
    %cst_7 = arith.constant 1.600000e+01 : f32
    %13 = vector.broadcast %cst_7 : f32 to vector<8x1xf32>
    %14 = arith.divf %12, %13 : vector<8x1xf32>
    %15 = vector.broadcast %7 : vector<8x1xf32> to vector<8x16xf32>
    %16 = arith.subf %3, %15 : vector<8x16xf32>
    %cst_8 = arith.constant 9.99999974E-6 : f32
    %17 = vector.broadcast %cst_8 : f32 to vector<8x1xf32>
    %18 = arith.addf %14, %17 : vector<8x1xf32>
    %19 = math.rsqrt %18 : vector<8x1xf32>
    %20 = vector.broadcast %19 : vector<8x1xf32> to vector<8x16xf32>
    %21 = arith.mulf %16, %20 : vector<8x16xf32>
    %c0_9 = arith.constant 0 : index
    %c0_10 = arith.constant 0 : index
    %22 = vector.load %arg4[%c0_9, %c0_10] : memref<1x16xf32, #tpu.memory_space<vmem>>, vector<1x16xf32>
    %23 = vector.broadcast %22 : vector<1x16xf32> to vector<8x16xf32>
    %24 = arith.mulf %21, %23 : vector<8x16xf32>
    %c0_11 = arith.constant 0 : index
    %c0_12 = arith.constant 0 : index
    %25 = vector.load %arg5[%c0_11, %c0_12] : memref<1x16xf32, #tpu.memory_space<vmem>>, vector<1x16xf32>
    %26 = vector.broadcast %25 : vector<1x16xf32> to vector<8x16xf32>
    %27 = arith.addf %24, %26 : vector<8x16xf32>
    %c0_13 = arith.constant 0 : index
    %c0_14 = arith.constant 0 : index
    %c0_15 = arith.constant 0 : index
    %28 = vector.load %arg6[%c0_13, %c0_14, %c0_15] : memref<1x8x16xf32, #tpu.memory_space<vmem>>, vector<1x8x16xf32>
    %29 = vector.shape_cast %28 : vector<1x8x16xf32> to vector<8x16xf32>
    %30 = vector.shape_cast %27 : vector<8x16xf32> to vector<1x8x16xf32>
    tpu.vector_store %arg6[%c0_13, %c0_14, %c0_15], %30 {strides = array<i32>} : memref<1x8x16xf32, #tpu.memory_space<vmem>>, vector<1x8x16xf32>,
    %31 = arith.truncf %27 : vector<8x16xf32> to vector<8x16xbf16>
    %c0_16 = arith.constant 0 : index
    %c0_17 = arith.constant 0 : index
    %c0_18 = arith.constant 0 : index
    %32 = vector.load %arg7[%c0_16, %c0_17, %c0_18] : memref<1x8x16xbf16, #tpu.memory_space<vmem>>, vector<1x8x16xbf16>
    %33 = vector.shape_cast %32 : vector<1x8x16xbf16> to vector<8x16xbf16>
    %34 = vector.shape_cast %31 : vector<8x16xbf16> to vector<1x8x16xbf16>
    tpu.vector_store %arg7[%c0_16, %c0_17, %c0_18], %34 {strides = array<i32>} : memref<1x8x16xbf16, #tpu.memory_space<vmem>>, vector<1x8x16xbf16>,
    return
  }
  func.func @transform_0(%arg0: i32, %arg1: i32) -> (i32, i32, i32) {
    %c0_i32 = arith.constant 0 : i32
    %c0_i32_0 = arith.constant 0 : i32
    return %arg0, %arg1, %c0_i32 : i32, i32, i32
  }
  func.func @transform_1(%arg0: i32, %arg1: i32) -> (i32, i32) {
    %c0_i32 = arith.constant 0 : i32
    %c0_i32_0 = arith.constant 0 : i32
    %c0_i32_1 = arith.constant 0 : i32
    return %c0_i32, %c0_i32_0 : i32, i32
  }
  func.func @transform_2(%arg0: i32, %arg1: i32) -> (i32, i32) {
    %c0_i32 = arith.constant 0 : i32
    %c0_i32_0 = arith.constant 0 : i32
    %c0_i32_1 = arith.constant 0 : i32
    return %c0_i32, %c0_i32_0 : i32, i32
  }
  func.func @transform_3(%arg0: i32, %arg1: i32) -> (i32, i32) {
    %c0_i32 = arith.constant 0 : i32
    %c0_i32_0 = arith.constant 0 : i32
    %c0_i32_1 = arith.constant 0 : i32
    return %c0_i32, %c0_i32_0 : i32, i32
  }
  func.func @transform_4(%arg0: i32, %arg1: i32) -> (i32, i32, i32) {
    %c0_i32 = arith.constant 0 : i32
    %c0_i32_0 = arith.constant 0 : i32
    return %arg0, %arg1, %c0_i32 : i32, i32, i32
  }
  func.func @transform_5(%arg0: i32, %arg1: i32) -> (i32, i32, i32) {
    %c0_i32 = arith.constant 0 : i32
    %c0_i32_0 = arith.constant 0 : i32
    return %arg0, %arg1, %c0_i32 : i32, i32, i32
  }
}

</mosaic_0001>

<llo_original>
// kernel: tpu_custom_call.1
$region0: #{tpu_custom_call.1}
  #allocation0 [shape = 'u32[]', space=smem, size = 0x4, offset = 0x4, fixed_abs, tag = 'smem constant byte address 0x4 - core index']
  #allocation1 [shape = 'u32[144,128]{1,0:T(1,128)}', space=vmem, size = 0x12000, scoped, tag = 'internal scratch']
  %s0 = inlined_call_operand.vmem [shape: bf16[2,8,32], index: 0, kind: input, shape index: {}]
  %s1 = inlined_call_operand.vmem [shape: bf16[32,16], index: 1, kind: input, shape index: {}]
  %s2 = inlined_call_operand.vmem [shape: f32[1,16], index: 2, kind: input, shape index: {}]
  %s3 = inlined_call_operand.vmem [shape: f32[1,16], index: 3, kind: input, shape index: {}]
  %s4 = inlined_call_operand.hbm [shape: f32[2,8,16], index: 4, kind: output, shape index: {0}]
  %s5 = inlined_call_operand.hbm [shape: bf16[2,8,16], index: 5, kind: output, shape index: {1}]
  %6 = xla_tuple %s4, %s5
  %s7 = sld [smem:[#allocation0]]
  $region57: #{tpu_custom_call.1} parent=0
    _
  %s9 = ssub.s32 1, %s7
  %s10 = scalar_select 0, %s9, %s7
  $region1: #{tpu_custom_call.1} parent=0
    #allocation2 [shape = 'u8[8192]{0}', space=vmem, size = 0x2000, scoped, tag = 'output window, operand 0']
    #allocation3 [shape = 's32[2]{0}', space=sflag, size = 0x8, scoped, tag = 'scoped memory for tpu_custom_call.1']
    #allocation4 [shape = 'u8[4096]{0}', space=vmem, size = 0x1000, scoped, tag = 'output window, operand 1']
    #allocation5 [shape = 's32[2]{0}', space=sflag, size = 0x8, scoped, tag = 'scoped memory for tpu_custom_call.1']
    %11 = vsyncpa [#allocation3], 0
    %s12 = scalar_lea.sflag [#allocation3], 1
    %13 = vsyncpa %s12, 0
    %14 = vsyncpa [#allocation5], 0
    %s15 = scalar_lea.sflag [#allocation5], 1
    %16 = vsyncpa %s15, 0
    loop: start=0, step=1, limit=4
    $region2: #{tpu_custom_call.1} parent=1 // loop_pre_header
      _
    $region3: #{tpu_custom_call.1} parent=1 // loop_header
      %s18 = sphi 0, %s22
      %p19 = scmp.ge.s32.totalorder %s18, 4
      %s25 = sphi 0, %s37
      %s26 = sphi 0, %s33
      %s27 = sphi 0, %s25
      %s28 = sphi 0, %s26
      %s29 = sphi 0, %s27
      %s30 = sphi 0, %s28
      %s42 = sphi 0, %s44
      %s45 = sphi 0, %s42
      %s46 = sphi 0, %s45
      %s62 = sphi 0, %s46
      %s66 = sphi 0, %s66
      %s68 = sphi 0, %s66
      %s69 = sphi 0, %s68
      %s83 = sphi 0, %s69
      %s87 = sphi 0, %s87
      %s89 = sphi 0, %s87
      %s90 = sphi 0, %s89
      %s104 = sphi 0, %s90
      %s108 = sphi 0, %s108
      %s110 = sphi 0, %s108
      %s111 = sphi 0, %s110
      %s125 = sphi 0, %s111
      %s133 = sphi 0, %s135
      %s136 = sphi 0, %s133
      %s137 = sphi 0, %s136
      %s153 = sphi 0, %s137
      %s161 = sphi 0, %s163
      %s164 = sphi 0, %s161
      %s165 = sphi 0, %s164
      %s181 = sphi 0, %s165
    $region4: #{tpu_custom_call.1} parent=1 // loop_header_branch
      %21 = sbr.rel (%p19) target = $region8
    $region5: #{tpu_custom_call.1} parent=1 // loop_body
      %s23 = ssub.s32 %s18, 1
      %s24 = ssub.s32 %s18, 2
      %s31 = sadd.s32 1, %s26
      %p32 = scmp.ge.s32.totalorder %s31, 1
      %s33 = scalar_select %p32, 0, %s31
      %s34 = sadd.s32 1, %s25
      %s35 = scalar_select %p32, %s34, %s25
      %p36 = scmp.ge.s32.totalorder %s35, 2
      %s37 = scalar_select %p36, 0, %s35
      %s38 = ssub.s32 %s25, %s37
      %s39 = ssub.s32 %s26, %s33
      %s40 = sor.u32 %s38, %s39
      %p41 = scmp.eq.s32.totalorder %s40, 0
      %s43 = sadd.s32 %s42, 1
      %s44 = scalar_select %p41, %s42, %s43
      %p47 = pneg %p41
      %p48 = scmp.eq.s32.totalorder %s18, 1
      %p49 = por %p47, %p48
      %p50 = scmp.ne.s32.totalorder %s42, %s45
      %p51 = scmp.eq.s32.totalorder %s18, 0
      %p52 = por %p50, %p51
      %p53 = scmp.ne.s32.totalorder %s42, %s45
      %p54 = scmp.eq.s32.totalorder %s23, 1
      %p55 = por %p53, %p54
      %p56 = scmp.ne.s32.totalorder %s45, %s46
      %p57 = scmp.eq.s32.totalorder %s23, 0
      %p58 = por %p56, %p57
      %p59 = scmp.ne.s32.totalorder %s45, %s46
      %p60 = scmp.eq.s32.totalorder %s24, 1
      %p61 = por %p59, %p60
      %p63 = scmp.ne.s32.totalorder %s46, %s62
      %p64 = scmp.eq.s32.totalorder %s24, 0
      %p65 = por %p63, %p64
      %s67 = sadd.s32 %s66, 1
      %p70 = scmp.eq.s32.totalorder %s18, 1
      %p71 = scmp.ne.s32.totalorder %s66, %s68
      %p72 = scmp.eq.s32.totalorder %s18, 0
      %p73 = por %p71, %p72
      %p74 = scmp.ne.s32.totalorder %s66, %s68
      %p75 = scmp.eq.s32.totalorder %s23, 1
      %p76 = por %p74, %p75
      %p77 = scmp.ne.s32.totalorder %s68, %s69
      %p78 = scmp.eq.s32.totalorder %s23, 0
      %p79 = por %p77, %p78
      %p80 = scmp.ne.s32.totalorder %s68, %s69
      %p81 = scmp.eq.s32.totalorder %s24, 1
      %p82 = por %p80, %p81
      %p84 = scmp.ne.s32.totalorder %s69, %s83
      %p85 = scmp.eq.s32.totalorder %s24, 0
      %p86 = por %p84, %p85
      %s88 = sadd.s32 %s87, 1
      %p91 = scmp.eq.s32.totalorder %s18, 1
      %p92 = scmp.ne.s32.totalorder %s87, %s89
      %p93 = scmp.eq.s32.totalorder %s18, 0
      %p94 = por %p92, %p93
      %p95 = scmp.ne.s32.totalorder %s87, %s89
      %p96 = scmp.eq.s32.totalorder %s23, 1
      %p97 = por %p95, %p96
      %p98 = scmp.ne.s32.totalorder %s89, %s90
      %p99 = scmp.eq.s32.totalorder %s23, 0
      %p100 = por %p98, %p99
      %p101 = scmp.ne.s32.totalorder %s89, %s90
      %p102 = scmp.eq.s32.totalorder %s24, 1
      %p103 = por %p101, %p102
      %p105 = scmp.ne.s32.totalorder %s90, %s104
      %p106 = scmp.eq.s32.totalorder %s24, 0
      %p107 = por %p105, %p106
      %s109 = sadd.s32 %s108, 1
      %p112 = scmp.eq.s32.totalorder %s18, 1
      %p113 = scmp.ne.s32.totalorder %s108, %s110
      %p114 = scmp.eq.s32.totalorder %s18, 0
      %p115 = por %p113, %p114
      %p116 = scmp.ne.s32.totalorder %s108, %s110
      %p117 = scmp.eq.s32.totalorder %s23, 1
      %p118 = por %p116, %p117
      %p119 = scmp.ne.s32.totalorder %s110, %s111
      %p120 = scmp.eq.s32.totalorder %s23, 0
      %p121 = por %p119, %p120
      %p122 = scmp.ne.s32.totalorder %s110, %s111
      %p123 = scmp.eq.s32.totalorder %s24, 1
      %p124 = por %p122, %p123
      %p126 = scmp.ne.s32.totalorder %s111, %s125
      %p127 = scmp.eq.s32.totalorder %s24, 0
      %p128 = por %p126, %p127
      %s129 = ssub.s32 %s25, %s37
      %s130 = ssub.s32 %s26, %s33
      %s131 = sor.u32 %s129, %s130
      %p132 = scmp.eq.s32.totalorder %s131, 0
      %s134 = sadd.s32 %s133, 1
      %s135 = scalar_select %p132, %s133, %s134
      %p138 = pneg %p132
      %p139 = scmp.eq.s32.totalorder %s18, 1
      %p140 = por %p138, %p139
      %p141 = scmp.ne.s32.totalorder %s133, %s136
      %p142 = scmp.eq.s32.totalorder %s18, 0
      %p143 = por %p141, %p142
      %p144 = scmp.ne.s32.totalorder %s133, %s136
      %p145 = scmp.eq.s32.totalorder %s23, 1
      %p146 = por %p144, %p145
      %p147 = scmp.ne.s32.totalorder %s136, %s137
      %p148 = scmp.eq.s32.totalorder %s23, 0
      %p149 = por %p147, %p148
      %p150 = scmp.ne.s32.totalorder %s136, %s137
      %p151 = scmp.eq.s32.totalorder %s24, 1
      %p152 = por %p150, %p151
      %p154 = scmp.ne.s32.totalorder %s137, %s153
      %p155 = scmp.eq.s32.totalorder %s24, 0
      %p156 = por %p154, %p155
      %s157 = ssub.s32 %s25, %s37
      %s158 = ssub.s32 %s26, %s33
      %s159 = sor.u32 %s157, %s158
      %p160 = scmp.eq.s32.totalorder %s159, 0
      %s162 = sadd.s32 %s161, 1
      %s163 = scalar_select %p160, %s161, %s162
      %p166 = pneg %p160
      %p167 = scmp.eq.s32.totalorder %s18, 1
      %p168 = por %p166, %p167
      %p169 = scmp.ne.s32.totalorder %s161, %s164
      %p170 = scmp.eq.s32.totalorder %s18, 0
      %p171 = por %p169, %p170
      %p172 = scmp.ne.s32.totalorder %s161, %s164
      %p173 = scmp.eq.s32.totalorder %s23, 1
      %p174 = por %p172, %p173
      %p175 = scmp.ne.s32.totalorder %s164, %s165
      %p176 = scmp.eq.s32.totalorder %s23, 0
      %p177 = por %p175, %p176
      %p178 = scmp.ne.s32.totalorder %s164, %s165
      %p179 = scmp.eq.s32.totalorder %s24, 1
      %p180 = por %p178, %p179
      %p182 = scmp.ne.s32.totalorder %s165, %s181
      %p183 = scmp.eq.s32.totalorder %s24, 0
      %p184 = por %p182, %p183
      %p185 = scmp.le.s32.totalorder 1, %s18
      %p186 = scmp.lt.s32.totalorder %s18, 3
      %p187 = pnand %p185, %p186
      %p188 = pneg %p187
      // Predicated region
      $region9: #{tpu_custom_call.1} parent=5 // pred_check
        _
      $region10: #{tpu_custom_call.1} parent=5 // pred_check_branch
        %190 = sbr.rel (%p187) target = $region12
      $region11: #{tpu_custom_call.1} parent=5 // pred_region
        %s191 = ssub.s32 %s18, 1
        // Predicated region
        $region13: #{tpu_custom_call.1} parent=11 // pred_check
          %p192 = pneg %p79
        $region14: #{tpu_custom_call.1} parent=11 // pred_check_branch
          %194 = sbr.rel (%p192) target = $region16
        $region15: #{tpu_custom_call.1} parent=11 // pred_region
          _
        $region16: #{tpu_custom_call.1} parent=11 // pred_fallthru
          _
        // Predicated region
        $region17: #{tpu_custom_call.1} parent=11 // pred_check
          %p195 = pneg %p100
        $region18: #{tpu_custom_call.1} parent=11 // pred_check_branch
          %197 = sbr.rel (%p195) target = $region20
        $region19: #{tpu_custom_call.1} parent=11 // pred_region
          _
        $region20: #{tpu_custom_call.1} parent=11 // pred_fallthru
          _
        // Predicated region
        $region21: #{tpu_custom_call.1} parent=11 // pred_check
          %p198 = pneg %p121
        $region22: #{tpu_custom_call.1} parent=11 // pred_check_branch
          %200 = sbr.rel (%p198) target = $region24
        $region23: #{tpu_custom_call.1} parent=11 // pred_region
          _
        $region24: #{tpu_custom_call.1} parent=11 // pred_fallthru
          _
      $region12: #{tpu_custom_call.1} parent=5 // pred_fallthru
        _
      %p201 = scmp.lt.s32.totalorder %s18, 2
      // Predicated region
      $region25: #{tpu_custom_call.1} parent=5 // pred_check
        %p202 = pneg %p201
      $region26: #{tpu_custom_call.1} parent=5 // pred_check_branch
        %204 = sbr.rel (%p202) target = $region28
      $region27: #{tpu_custom_call.1} parent=5 // pred_region
        // Predicated region
        $region29: #{tpu_custom_call.1} parent=27 // pred_check
          %p205 = pneg %p52
        $region30: #{tpu_custom_call.1} parent=27 // pred_check_branch
          %207 = sbr.rel (%p205) target = $region32
        $region31: #{tpu_custom_call.1} parent=27 // pred_region
          %p208 = scmp.lt.s32.totalorder %s25, 1
          %s209 = scalar_select %p208, %s25, 1
          %p210 = scmp.lt.s32.totalorder %s26, 0
          %s211 = scalar_select %p210, %s26, 0
          %s212 = sadd.s32 %s211, %s209
          %s213 = smul.addr %s212, 4
          %s214 = scalar_lea.vmem %s0, %s213
        $region32: #{tpu_custom_call.1} parent=27 // pred_fallthru
          _
      $region28: #{tpu_custom_call.1} parent=5 // pred_fallthru
        _
      %p215 = scmp.le.s32.totalorder 1, %s18
      %p216 = scmp.lt.s32.totalorder %s18, 3
      %p217 = pnand %p215, %p216
      %p218 = pneg %p217
      // Predicated region
      $region33: #{tpu_custom_call.1} parent=5 // pred_check
        _
      $region34: #{tpu_custom_call.1} parent=5 // pred_check_branch
        %220 = sbr.rel (%p217) target = $region36
      $region35: #{tpu_custom_call.1} parent=5 // pred_region
        %s221 = ssub.s32 %s18, 1
        %p222 = scmp.lt.s32.totalorder %s27, 1
        %s223 = scalar_select %p222, %s27, 1
        %p224 = scmp.lt.s32.totalorder %s28, 0
        %s225 = scalar_select %p224, %s28, 0
        %s226 = sadd.s32 %s225, %s223
        %s227 = smul.addr %s226, 4
        %s228 = scalar_lea.vmem %s0, %s227
        %p229 = pneg %p58
        %p230 = pneg %p55
        %p231 = pneg %p79
        %p232 = pneg %p76
        %p233 = pneg %p100
        %p234 = pneg %p97
        %p235 = pneg %p121
        %p236 = pneg %p118
        %p237 = pneg %p149
        %p238 = pneg %p146
        %s239 = sand.u32 %s136, 1
        %s240 = scalar_lea.sflag [#allocation3], %s239
        %s241 = sand.u32 %s136, 1
        %s242 = smul.addr %s241, 8
        %s243 = scalar_lea.vmem [#allocation2], %s242
        %p244 = pneg %p177
        %p245 = pneg %p174
        %s246 = sand.u32 %s164, 1
        %s247 = scalar_lea.sflag [#allocation5], %s246
        %s248 = sand.u32 %s164, 1
        %s249 = smul.addr %s248, 4
        %s250 = scalar_lea.vmem [#allocation4], %s249
        %p251 = scmp.lt.s32.totalorder %s27, 1
        %s252 = scalar_select %p251, %s27, 1
        %p253 = scmp.lt.s32.totalorder %s28, 0
        %s254 = scalar_select %p253, %s28, 0
        %s255 = sadd.s32 %s254, %s252
        %s256 = smul.addr %s255, 4
        %s257 = scalar_lea.vmem %s0, %s256
        %v259 = vld [vmem:[%s257] sm:$0xf]
        %v260 = vld [vmem:[%s1] sm:$0xf]
        %v261 = vld [vmem:[%s1 + $0x4] sm:$0xf]
        %v262 = vld [vmem:[%s1 + $0x8] sm:$0xf]
        %v263 = vld [vmem:[%s1 + $0xc] sm:$0xf]
        %v268 = vunpack.c.l.b16 %v260
        %v269 = vunpack.c.l.b16 %v261
        %v270 = vunpack.c.l.b16 %v262
        %v271 = vunpack.c.l.b16 %v263
        %v272 = vpack.c.b16 %v269, %v268
        %v273 = vpack.c.b16 %v271, %v270
        %vm276 = vcmask 261120
        %v278 = vsel %vm276, %v259, 0
        %280 = vmatprep.subr.bf16.mxu0 0
        %281 = vmatpush1.bf16.msra.mxu0 %v272
        %282 = vmatprep.subr.bf16.mxu0 0
        %283 = vmatpush1.bf16.msra.mxu0 %v273
        %284 = vmatprep.subr.bf16.mxu0 0
        %285 = vmatpush1.bf16.msra.mxu0 0
        %286 = vmatprep.subr.bf16.mxu0 0
        %287 = vmatpush1.bf16.msra.mxu0 0
        %288 = vmatprep.subr.bf16.mxu0 0
        %289 = vmatpush1.bf16.msra.mxu0 0
        %290 = vmatprep.subr.bf16.mxu0 0
        %291 = vmatpush1.bf16.msra.mxu0 0
        %292 = vmatprep.subr.bf16.mxu0 0
        %293 = vmatpush1.bf16.msra.mxu0 0
        %294 = vmatprep.subr.bf16.mxu0 0
        %295 = vmatpush1.bf16.msra.mxu0 0
        %296 = vmatprep.subr.bf16.mxu0 0
        %297 = vmatpush1.bf16.msra.mxu0 0
        %298 = vmatprep.subr.bf16.mxu0 0
        %299 = vmatpush1.bf16.msra.mxu0 0
        %300 = vmatprep.subr.bf16.mxu0 0
        %301 = vmatpush1.bf16.msra.mxu0 0
        %302 = vmatprep.subr.bf16.mxu0 0
        %303 = vmatpush1.bf16.msra.mxu0 0
        %304 = vmatprep.subr.bf16.mxu0 0
        %305 = vmatpush1.bf16.msra.mxu0 0
        %306 = vmatprep.subr.bf16.mxu0 0
        %307 = vmatpush1.bf16.msra.mxu0 0
        %308 = vmatprep.subr.bf16.mxu0 0
        %309 = vmatpush1.bf16.msra.mxu0 0
        %310 = vmatprep.subr.bf16.mxu0 0
        %311 = vmatpush1.bf16.msra.mxu0 0
        %312 = vmatprep.mubr.bf16.mxu0 0
        %313 = vmatmul.mubr.bf16.gmra.mrb[0].mxu0 %v278
        %v314 = vpop.f32.mrb[0].mxu0
        %v315 = vadd.f32 0.0, %v314
        %v316 = vpop.f32.mrb[0].mxu0
        %v317 = vpop.f32.mrb[0].mxu0
        %v318 = vpop.f32.mrb[0].mxu0
        %319 = vdwg.mxu0
        %vm320 = vcmask 130048
        %v321 = vsel %vm320, %v315, 0.0
        %322 = vadd.xlane.f32.xlu0 %v321
        %v323 = vpop.xlane.xlu0 %322
        %v324 = vrcp.pop 16.0
        %v325 = vmul.f32 %v323, %v324
        %v326 = vsub.f32 %v315, %v325
        %v327 = vmul.f32 %v326, %v326
        %v328 = vsel %vm320, %v327, 0.0
        %329 = vadd.xlane.f32.xlu0 %v328
        %v330 = vpop.xlane.xlu0 %329
        %v331 = vmul.f32 %v330, %v324
        %v332 = vadd.f32 %v331, 1e-05
        %v333 = vrsqrt.pop %v332
        %v334 = vmul.f32 %v326, %v333
        %v335 = vld [vmem:[%s2] sm:$0x1]
        %v337 = vlaneseq
        %v338 = vshrl.u32 %v337, 7
        %v339 = vsub.s32 0, %v338
        %v340 = vrot.slane %v335, %v339
        %v342 = vmul.f32 %v334, %v340
        %v343 = vld [vmem:[%s3] sm:$0x1]
        %v345 = vlaneseq
        %v346 = vshrl.u32 %v345, 7
        %v347 = vsub.s32 0, %v346
        %v348 = vrot.slane %v343, %v347
        %v350 = vadd.f32 %v342, %v348
        %351 = vst.msk [vmem:[%s243] sm:$0xff] %vm320, %v350
        %v352 = vpack.c.bf16 %v350, %v350
        %vm353 = vcmask 125952
        %354 = vst.msk [vmem:[%s250] sm:$0xf] %vm353, %v352
        %s355 = sand.u32 %s136, 1
        %s356 = scalar_lea.sflag [#allocation3], %s355
        %s357 = sand.u32 %s136, 1
        %s358 = smul.addr %s357, 8
        %s359 = scalar_lea.vmem [#allocation2], %s358
        %s360 = sand.u32 %s164, 1
        %s361 = scalar_lea.sflag [#allocation5], %s360
        %s362 = sand.u32 %s164, 1
        %s363 = smul.addr %s362, 4
        %s364 = scalar_lea.vmem [#allocation4], %s363
        // Predicated region
        $region37: #{tpu_custom_call.1} parent=35 // pred_check
          %p365 = pneg %p146
        $region38: #{tpu_custom_call.1} parent=35 // pred_check_branch
          %367 = sbr.rel (%p365) target = $region40
        $region39: #{tpu_custom_call.1} parent=35 // pred_region
          %s369 = ssub.s32 128, 128
          %370 = vsyncadd %s356, %s369
          %s371 = sadd.s32 %s28, %s27
          %s372 = smul.addr %s371, 128
          %s373 = scalar_lea.hbm %s4, %s372
          %s375 = sshll.u32 %s359, 4
          %s376 = int_to_ptr.vmem [resolvable:$true] %s375
          %378 = dma.vmem_to_hbm [thread:$0]  %s376, 128, %s373, %s356
        $region40: #{tpu_custom_call.1} parent=35 // pred_fallthru
          _
        // Predicated region
        $region41: #{tpu_custom_call.1} parent=35 // pred_check
          %p379 = pneg %p174
        $region42: #{tpu_custom_call.1} parent=35 // pred_check_branch
          %381 = sbr.rel (%p379) target = $region44
        $region43: #{tpu_custom_call.1} parent=35 // pred_region
          %s383 = ssub.s32 64, 64
          %384 = vsyncadd %s361, %s383
          %s385 = sadd.s32 %s28, %s27
          %s386 = smul.addr %s385, 64
          %s387 = scalar_lea.hbm %s5, %s386
          %s389 = sshll.u32 %s364, 4
          %s390 = int_to_ptr.vmem [resolvable:$true] %s389
          %392 = dma.vmem_to_hbm [thread:$0]  %s390, 64, %s387, %s361
        $region44: #{tpu_custom_call.1} parent=35 // pred_fallthru
          _
      $region36: #{tpu_custom_call.1} parent=5 // pred_fallthru
        _
      %p393 = scmp.le.s32.totalorder 2, %s18
      // Predicated region
      $region45: #{tpu_custom_call.1} parent=5 // pred_check
        %p394 = pneg %p393
      $region46: #{tpu_custom_call.1} parent=5 // pred_check_branch
        %396 = sbr.rel (%p394) target = $region48
      $region47: #{tpu_custom_call.1} parent=5 // pred_region
        %s397 = ssub.s32 %s18, 2
        // Predicated region
        $region49: #{tpu_custom_call.1} parent=47 // pred_check
          %p398 = pneg %p152
        $region50: #{tpu_custom_call.1} parent=47 // pred_check_branch
          %400 = sbr.rel (%p398) target = $region52
        $region51: #{tpu_custom_call.1} parent=47 // pred_region
          %s401 = sand.u32 %s137, 1
          %s402 = scalar_lea.sflag [#allocation3], %s401
          %s403 = sand.u32 %s137, 1
          %s404 = smul.addr %s403, 8
          %s405 = scalar_lea.vmem [#allocation2], %s404
          %406 = dma.done %s402, 128
        $region52: #{tpu_custom_call.1} parent=47 // pred_fallthru
          _
        // Predicated region
        $region53: #{tpu_custom_call.1} parent=47 // pred_check
          %p407 = pneg %p180
        $region54: #{tpu_custom_call.1} parent=47 // pred_check_branch
          %409 = sbr.rel (%p407) target = $region56
        $region55: #{tpu_custom_call.1} parent=47 // pred_region
          %s410 = sand.u32 %s165, 1
          %s411 = scalar_lea.sflag [#allocation5], %s410
          %s412 = sand.u32 %s165, 1
          %s413 = smul.addr %s412, 4
          %s414 = scalar_lea.vmem [#allocation4], %s413
          %415 = dma.done %s411, 64
        $region56: #{tpu_custom_call.1} parent=47 // pred_fallthru
          _
      $region48: #{tpu_custom_call.1} parent=5 // pred_fallthru
        _
    $region6: #{tpu_custom_call.1} parent=1 // loop_footer
      %s22 = sadd.s32 1, %s18
    $region7: #{tpu_custom_call.1} parent=1 // loop_footer_branch
      %17 = sbr.rel target = $region3
    $region8: #{tpu_custom_call.1} parent=1 // loop_exit
      _
    %416 = vsyncpa [#allocation3], 1
    %s417 = scalar_lea.sflag [#allocation3], 1
    %418 = vsyncpa %s417, 1
    %419 = vsyncpa [#allocation5], 1
    %s420 = scalar_lea.sflag [#allocation5], 1
    %421 = vsyncpa %s420, 1

// kernel: tpu_custom_call.1
$region0: #{tpu_custom_call.1}
  #allocation0 [shape = 'u32[]', space=smem, size = 0x4, offset = 0x4, fixed_abs, tag = 'smem constant byte address 0x4 - core index']
  #allocation1 [shape = 'u32[144,128]{1,0:T(1,128)}', space=vmem, size = 0x12000, scoped, tag = 'internal scratch']
  %s0 = inlined_call_operand.vmem [shape: bf16[2,8,32], index: 0, kind: input, shape index: {}]
  %s1 = inlined_call_operand.vmem [shape: bf16[32,16], index: 1, kind: input, shape index: {}]
  %s2 = inlined_call_operand.vmem [shape: f32[1,16], index: 2, kind: input, shape index: {}]
  %s3 = inlined_call_operand.vmem [shape: f32[1,16], index: 3, kind: input, shape index: {}]
  %s4 = inlined_call_operand.hbm [shape: f32[2,8,16], index: 4, kind: output, shape index: {0}]
  %s5 = inlined_call_operand.hbm [shape: bf16[2,8,16], index: 5, kind: output, shape index: {1}]
  %6 = xla_tuple %s4, %s5
  %s7 = sld [smem:[#allocation0]]
  $region57: #{tpu_custom_call.1} parent=0
    _
  %s9 = ssub.s32 1, %s7
  %s10 = scalar_select 0, %s9, %s7
  $region1: #{tpu_custom_call.1} parent=0
    #allocation2 [shape = 'u8[8192]{0}', space=vmem, size = 0x2000, scoped, tag = 'output window, operand 0']
    #allocation3 [shape = 's32[2]{0}', space=sflag, size = 0x8, scoped, tag = 'scoped memory for tpu_custom_call.1']
    #allocation4 [shape = 'u8[4096]{0}', space=vmem, size = 0x1000, scoped, tag = 'output window, operand 1']
    #allocation5 [shape = 's32[2]{0}', space=sflag, size = 0x8, scoped, tag = 'scoped memory for tpu_custom_call.1']
    %11 = vsyncpa [#allocation3], 0
    %s12 = scalar_lea.sflag [#allocation3], 1
    %13 = vsyncpa %s12, 0
    %14 = vsyncpa [#allocation5], 0
    %s15 = scalar_lea.sflag [#allocation5], 1
    %16 = vsyncpa %s15, 0
    loop: start=0, step=1, limit=4
    $region2: #{tpu_custom_call.1} parent=1 // loop_pre_header
      _
    $region3: #{tpu_custom_call.1} parent=1 // loop_header
      %s18 = sphi 0, %s22
      %p19 = scmp.ge.s32.totalorder %s18, 4
      %s25 = sphi 0, %s37
      %s26 = sphi 0, %s33
      %s27 = sphi 0, %s25
      %s28 = sphi 0, %s26
      %s29 = sphi 0, %s27
      %s30 = sphi 0, %s28
      %s42 = sphi 0, %s44
      %s45 = sphi 0, %s42
      %s46 = sphi 0, %s45
      %s62 = sphi 0, %s46
      %s66 = sphi 0, %s66
      %s68 = sphi 0, %s66
      %s69 = sphi 0, %s68
      %s83 = sphi 0, %s69
      %s87 = sphi 0, %s87
      %s89 = sphi 0, %s87
      %s90 = sphi 0, %s89
      %s104 = sphi 0, %s90
      %s108 = sphi 0, %s108
      %s110 = sphi 0, %s108
      %s111 = sphi 0, %s110
      %s125 = sphi 0, %s111
      %s133 = sphi 0, %s135
      %s136 = sphi 0, %s133
      %s137 = sphi 0, %s136
      %s153 = sphi 0, %s137
      %s161 = sphi 0, %s163
      %s164 = sphi 0, %s161
      %s165 = sphi 0, %s164
      %s181 = sphi 0, %s165
    $region4: #{tpu_custom_call.1} parent=1 // loop_header_branch
      %21 = sbr.rel (%p19) target = $region8
    $region5: #{tpu_custom_call.1} parent=1 // loop_body
      %s23 = ssub.s32 %s18, 1
      %s24 = ssub.s32 %s18, 2
      %s31 = sadd.s32 1, %s26
      %p32 = scmp.ge.s32.totalorder %s31, 1
      %s33 = scalar_select %p32, 0, %s31
      %s34 = sadd.s32 1, %s25
      %s35 = scalar_select %p32, %s34, %s25
      %p36 = scmp.ge.s32.totalorder %s35, 2
      %s37 = scalar_select %p36, 0, %s35
      %s38 = ssub.s32 %s25, %s37
      %s39 = ssub.s32 %s26, %s33
      %s40 = sor.u32 %s38, %s39
      %p41 = scmp.eq.s32.totalorder %s40, 0
      %s43 = sadd.s32 %s42, 1
      %s44 = scalar_select %p41, %s42, %s43
      %p47 = pneg %p41
      %p48 = scmp.eq.s32.totalorder %s18, 1
      %p49 = por %p47, %p48
      %p50 = scmp.ne.s32.totalorder %s42, %s45
      %p51 = scmp.eq.s32.totalorder %s18, 0
      %p52 = por %p50, %p51
      %p53 = scmp.ne.s32.totalorder %s42, %s45
      %p54 = scmp.eq.s32.totalorder %s23, 1
      %p55 = por %p53, %p54
      %p56 = scmp.ne.s32.totalorder %s45, %s46
      %p57 = scmp.eq.s32.totalorder %s23, 0
      %p58 = por %p56, %p57
      %p59 = scmp.ne.s32.totalorder %s45, %s46
      %p60 = scmp.eq.s32.totalorder %s24, 1
      %p61 = por %p59, %p60
      %p63 = scmp.ne.s32.totalorder %s46, %s62
      %p64 = scmp.eq.s32.totalorder %s24, 0
      %p65 = por %p63, %p64
      %s67 = sadd.s32 %s66, 1
      %p70 = scmp.eq.s32.totalorder %s18, 1
      %p71 = scmp.ne.s32.totalorder %s66, %s68
      %p72 = scmp.eq.s32.totalorder %s18, 0
      %p73 = por %p71, %p72
      %p74 = scmp.ne.s32.totalorder %s66, %s68
      %p75 = scmp.eq.s32.totalorder %s23, 1
      %p76 = por %p74, %p75
      %p77 = scmp.ne.s32.totalorder %s68, %s69
      %p78 = scmp.eq.s32.totalorder %s23, 0
      %p79 = por %p77, %p78
      %p80 = scmp.ne.s32.totalorder %s68, %s69
      %p81 = scmp.eq.s32.totalorder %s24, 1
      %p82 = por %p80, %p81
      %p84 = scmp.ne.s32.totalorder %s69, %s83
      %p85 = scmp.eq.s32.totalorder %s24, 0
      %p86 = por %p84, %p85
      %s88 = sadd.s32 %s87, 1
      %p91 = scmp.eq.s32.totalorder %s18, 1
      %p92 = scmp.ne.s32.totalorder %s87, %s89
      %p93 = scmp.eq.s32.totalorder %s18, 0
      %p94 = por %p92, %p93
      %p95 = scmp.ne.s32.totalorder %s87, %s89
      %p96 = scmp.eq.s32.totalorder %s23, 1
      %p97 = por %p95, %p96
      %p98 = scmp.ne.s32.totalorder %s89, %s90
      %p99 = scmp.eq.s32.totalorder %s23, 0
      %p100 = por %p98, %p99
      %p101 = scmp.ne.s32.totalorder %s89, %s90
      %p102 = scmp.eq.s32.totalorder %s24, 1
      %p103 = por %p101, %p102
      %p105 = scmp.ne.s32.totalorder %s90, %s104
      %p106 = scmp.eq.s32.totalorder %s24, 0
      %p107 = por %p105, %p106
      %s109 = sadd.s32 %s108, 1
      %p112 = scmp.eq.s32.totalorder %s18, 1
      %p113 = scmp.ne.s32.totalorder %s108, %s110
      %p114 = scmp.eq.s32.totalorder %s18, 0
      %p115 = por %p113, %p114
      %p116 = scmp.ne.s32.totalorder %s108, %s110
      %p117 = scmp.eq.s32.totalorder %s23, 1
      %p118 = por %p116, %p117
      %p119 = scmp.ne.s32.totalorder %s110, %s111
      %p120 = scmp.eq.s32.totalorder %s23, 0
      %p121 = por %p119, %p120
      %p122 = scmp.ne.s32.totalorder %s110, %s111
      %p123 = scmp.eq.s32.totalorder %s24, 1
      %p124 = por %p122, %p123
      %p126 = scmp.ne.s32.totalorder %s111, %s125
      %p127 = scmp.eq.s32.totalorder %s24, 0
      %p128 = por %p126, %p127
      %s129 = ssub.s32 %s25, %s37
      %s130 = ssub.s32 %s26, %s33
      %s131 = sor.u32 %s129, %s130
      %p132 = scmp.eq.s32.totalorder %s131, 0
      %s134 = sadd.s32 %s133, 1
      %s135 = scalar_select %p132, %s133, %s134
      %p138 = pneg %p132
      %p139 = scmp.eq.s32.totalorder %s18, 1
      %p140 = por %p138, %p139
      %p141 = scmp.ne.s32.totalorder %s133, %s136
      %p142 = scmp.eq.s32.totalorder %s18, 0
      %p143 = por %p141, %p142
      %p144 = scmp.ne.s32.totalorder %s133, %s136
      %p145 = scmp.eq.s32.totalorder %s23, 1
      %p146 = por %p144, %p145
      %p147 = scmp.ne.s32.totalorder %s136, %s137
      %p148 = scmp.eq.s32.totalorder %s23, 0
      %p149 = por %p147, %p148
      %p150 = scmp.ne.s32.totalorder %s136, %s137
      %p151 = scmp.eq.s32.totalorder %s24, 1
      %p152 = por %p150, %p151
      %p154 = scmp.ne.s32.totalorder %s137, %s153
      %p155 = scmp.eq.s32.totalorder %s24, 0
      %p156 = por %p154, %p155
      %s157 = ssub.s32 %s25, %s37
      %s158 = ssub.s32 %s26, %s33
      %s159 = sor.u32 %s157, %s158
      %p160 = scmp.eq.s32.totalorder %s159, 0
      %s162 = sadd.s32 %s161, 1
      %s163 = scalar_select %p160, %s161, %s162
      %p166 = pneg %p160
      %p167 = scmp.eq.s32.totalorder %s18, 1
      %p168 = por %p166, %p167
      %p169 = scmp.ne.s32.totalorder %s161, %s164
      %p170 = scmp.eq.s32.totalorder %s18, 0
      %p171 = por %p169, %p170
      %p172 = scmp.ne.s32.totalorder %s161, %s164
      %p173 = scmp.eq.s32.totalorder %s23, 1
      %p174 = por %p172, %p173
      %p175 = scmp.ne.s32.totalorder %s164, %s165
      %p176 = scmp.eq.s32.totalorder %s23, 0
      %p177 = por %p175, %p176
      %p178 = scmp.ne.s32.totalorder %s164, %s165
      %p179 = scmp.eq.s32.totalorder %s24, 1
      %p180 = por %p178, %p179
      %p182 = scmp.ne.s32.totalorder %s165, %s181
      %p183 = scmp.eq.s32.totalorder %s24, 0
      %p184 = por %p182, %p183
      %p185 = scmp.le.s32.totalorder 1, %s18
      %p186 = scmp.lt.s32.totalorder %s18, 3
      %p187 = pnand %p185, %p186
      %p188 = pneg %p187
      // Predicated region
      $region9: #{tpu_custom_call.1} parent=5 // pred_check
        _
      $region10: #{tpu_custom_call.1} parent=5 // pred_check_branch
        %190 = sbr.rel (%p187) target = $region12
      $region11: #{tpu_custom_call.1} parent=5 // pred_region
        %s191 = ssub.s32 %s18, 1
        // Predicated region
        $region13: #{tpu_custom_call.1} parent=11 // pred_check
          %p192 = pneg %p79
        $region14: #{tpu_custom_call.1} parent=11 // pred_check_branch
          %194 = sbr.rel (%p192) target = $region16
        $region15: #{tpu_custom_call.1} parent=11 // pred_region
          _
        $region16: #{tpu_custom_call.1} parent=11 // pred_fallthru
          _
        // Predicated region
        $region17: #{tpu_custom_call.1} parent=11 // pred_check
          %p195 = pneg %p100
        $region18: #{tpu_custom_call.1} parent=11 // pred_check_branch
          %197 = sbr.rel (%p195) target = $region20
        $region19: #{tpu_custom_call.1} parent=11 // pred_region
          _
        $region20: #{tpu_custom_call.1} parent=11 // pred_fallthru
          _
        // Predicated region
        $region21: #{tpu_custom_call.1} parent=11 // pred_check
          %p198 = pneg %p121
        $region22: #{tpu_custom_call.1} parent=11 // pred_check_branch
          %200 = sbr.rel (%p198) target = $region24
        $region23: #{tpu_custom_call.1} parent=11 // pred_region
          _
        $region24: #{tpu_custom_call.1} parent=11 // pred_fallthru
          _
      $region12: #{tpu_custom_call.1} parent=5 // pred_fallthru
        _
      %p201 = scmp.lt.s32.totalorder %s18, 2
      // Predicated region
      $region25: #{tpu_custom_call.1} parent=5 // pred_check
        %p202 = pneg %p201
      $region26: #{tpu_custom_call.1} parent=5 // pred_check_branch
        %204 = sbr.rel (%p202) target = $region28
      $region27: #{tpu_custom_call.1} parent=5 // pred_region
        // Predicated region
        $region29: #{tpu_custom_call.1} parent=27 // pred_check
          %p205 = pneg %p52
        $region30: #{tpu_custom_call.1} parent=27 // pred_check_branch
          %207 = sbr.rel (%p205) target = $region32
        $region31: #{tpu_custom_call.1} parent=27 // pred_region
          %p208 = scmp.lt.s32.totalorder %s25, 1
          %s209 = scalar_select %p208, %s25, 1
          %p210 = scmp.lt.s32.totalorder %s26, 0
          %s211 = scalar_select %p210, %s26, 0
          %s212 = sadd.s32 %s211, %s209
          %s213 = smul.addr %s212, 4
          %s214 = scalar_lea.vmem %s0, %s213
        $region32: #{tpu_custom_call.1} parent=27 // pred_fallthru
          _
      $region28: #{tpu_custom_call.1} parent=5 // pred_fallthru
        _
      %p215 = scmp.le.s32.totalorder 1, %s18
      %p216 = scmp.lt.s32.totalorder %s18, 3
      %p217 = pnand %p215, %p216
      %p218 = pneg %p217
      // Predicated region
      $region33: #{tpu_custom_call.1} parent=5 // pred_check
        _
      $region34: #{tpu_custom_call.1} parent=5 // pred_check_branch
        %220 = sbr.rel (%p217) target = $region36
      $region35: #{tpu_custom_call.1} parent=5 // pred_region
        %s221 = ssub.s32 %s18, 1
        %p222 = scmp.lt.s32.totalorder %s27, 1
        %s223 = scalar_select %p222, %s27, 1
        %p224 = scmp.lt.s32.totalorder %s28, 0
        %s225 = scalar_select %p224, %s28, 0
        %s226 = sadd.s32 %s225, %s223
        %s227 = smul.addr %s226, 4
        %s228 = scalar_lea.vmem %s0, %s227
        %p229 = pneg %p58
        %p230 = pneg %p55
        %p231 = pneg %p79
        %p232 = pneg %p76
        %p233 = pneg %p100
        %p234 = pneg %p97
        %p235 = pneg %p121
        %p236 = pneg %p118
        %p237 = pneg %p149
        %p238 = pneg %p146
        %s239 = sand.u32 %s136, 1
        %s240 = scalar_lea.sflag [#allocation3], %s239
        %s241 = sand.u32 %s136, 1
        %s242 = smul.addr %s241, 8
        %s243 = scalar_lea.vmem [#allocation2], %s242
        %p244 = pneg %p177
        %p245 = pneg %p174
        %s246 = sand.u32 %s164, 1
        %s247 = scalar_lea.sflag [#allocation5], %s246
        %s248 = sand.u32 %s164, 1
        %s249 = smul.addr %s248, 4
        %s250 = scalar_lea.vmem [#allocation4], %s249
        %p251 = scmp.lt.s32.totalorder %s27, 1
        %s252 = scalar_select %p251, %s27, 1
        %p253 = scmp.lt.s32.totalorder %s28, 0
        %s254 = scalar_select %p253, %s28, 0
        %s255 = sadd.s32 %s254, %s252
        %s256 = smul.addr %s255, 4
        %s257 = scalar_lea.vmem %s0, %s256
        %v259 = vld [vmem:[%s257] sm:$0xf]
        %v260 = vld [vmem:[%s1] sm:$0xf]
        %v261 = vld [vmem:[%s1 + $0x4] sm:$0xf]
        %v262 = vld [vmem:[%s1 + $0x8] sm:$0xf]
        %v263 = vld [vmem:[%s1 + $0xc] sm:$0xf]
        %v268 = vunpack.c.l.b16 %v260
        %v269 = vunpack.c.l.b16 %v261
        %v270 = vunpack.c.l.b16 %v262
        %v271 = vunpack.c.l.b16 %v263
        %v272 = vpack.c.b16 %v269, %v268
        %v273 = vpack.c.b16 %v271, %v270
        %vm276 = vcmask 261120
        %v278 = vsel %vm276, %v259, 0
        %280 = vmatprep.subr.bf16.mxu0 0
        %281 = vmatpush1.bf16.msra.mxu0 %v272
        %282 = vmatprep.subr.bf16.mxu0 0
        %283 = vmatpush1.bf16.msra.mxu0 %v273
        %284 = vmatprep.subr.bf16.mxu0 0
        %285 = vmatpush1.bf16.msra.mxu0 0
        %286 = vmatprep.subr.bf16.mxu0 0
        %287 = vmatpush1.bf16.msra.mxu0 0
        %288 = vmatprep.subr.bf16.mxu0 0
        %289 = vmatpush1.bf16.msra.mxu0 0
        %290 = vmatprep.subr.bf16.mxu0 0
        %291 = vmatpush1.bf16.msra.mxu0 0
        %292 = vmatprep.subr.bf16.mxu0 0
        %293 = vmatpush1.bf16.msra.mxu0 0
        %294 = vmatprep.subr.bf16.mxu0 0
        %295 = vmatpush1.bf16.msra.mxu0 0
        %296 = vmatprep.subr.bf16.mxu0 0
        %297 = vmatpush1.bf16.msra.mxu0 0
        %298 = vmatprep.subr.bf16.mxu0 0
        %299 = vmatpush1.bf16.msra.mxu0 0
        %300 = vmatprep.subr.bf16.mxu0 0
        %301 = vmatpush1.bf16.msra.mxu0 0
        %302 = vmatprep.subr.bf16.mxu0 0
        %303 = vmatpush1.bf16.msra.mxu0 0
        %304 = vmatprep.subr.bf16.mxu0 0
        %305 = vmatpush1.bf16.msra.mxu0 0
        %306 = vmatprep.subr.bf16.mxu0 0
        %307 = vmatpush1.bf16.msra.mxu0 0
        %308 = vmatprep.subr.bf16.mxu0 0
        %309 = vmatpush1.bf16.msra.mxu0 0
        %310 = vmatprep.subr.bf16.mxu0 0
        %311 = vmatpush1.bf16.msra.mxu0 0
        %312 = vmatprep.mubr.bf16.mxu0 0
        %313 = vmatmul.mubr.bf16.gmra.mrb[0].mxu0 %v278
        %v314 = vpop.f32.mrb[0].mxu0
        %v315 = vadd.f32 0.0, %v314
        %v316 = vpop.f32.mrb[0].mxu0
        %v317 = vpop.f32.mrb[0].mxu0
        %v318 = vpop.f32.mrb[0].mxu0
        %319 = vdwg.mxu0
        %vm320 = vcmask 130048
        %v321 = vsel %vm320, %v315, 0.0
        %322 = vadd.xlane.f32.xlu0 %v321
        %v323 = vpop.xlane.xlu0 %322
        %v324 = vrcp.pop 16.0
        %v325 = vmul.f32 %v323, %v324
        %v326 = vsub.f32 %v315, %v325
        %v327 = vmul.f32 %v326, %v326
        %v328 = vsel %vm320, %v327, 0.0
        %329 = vadd.xlane.f32.xlu0 %v328
        %v330 = vpop.xlane.xlu0 %329
        %v331 = vmul.f32 %v330, %v324
        %v332 = vadd.f32 %v331, 1e-05
        %v333 = vrsqrt.pop %v332
        %v334 = vmul.f32 %v326, %v333
        %v335 = vld [vmem:[%s2] sm:$0x1]
        %v337 = vlaneseq
        %v338 = vshrl.u32 %v337, 7
        %v339 = vsub.s32 0, %v338
        %v340 = vrot.slane %v335, %v339
        %v342 = vmul.f32 %v334, %v340
        %v343 = vld [vmem:[%s3] sm:$0x1]
        %v345 = vlaneseq
        %v346 = vshrl.u32 %v345, 7
        %v347 = vsub.s32 0, %v346
        %v348 = vrot.slane %v343, %v347
        %v350 = vadd.f32 %v342, %v348
        %351 = vst.msk [vmem:[%s243] sm:$0xff] %vm320, %v350
        %v352 = vpack.c.bf16 %v350, %v350
        %vm353 = vcmask 125952
        %354 = vst.msk [vmem:[%s250] sm:$0xf] %vm353, %v352
        %s355 = sand.u32 %s136, 1
        %s356 = scalar_lea.sflag [#allocation3], %s355
        %s357 = sand.u32 %s136, 1
        %s358 = smul.addr %s357, 8
        %s359 = scalar_lea.vmem [#allocation2], %s358
        %s360 = sand.u32 %s164, 1
        %s361 = scalar_lea.sflag [#allocation5], %s360
        %s362 = sand.u32 %s164, 1
        %s363 = smul.addr %s362, 4
        %s364 = scalar_lea.vmem [#allocation4], %s363
        // Predicated region
        $region37: #{tpu_custom_call.1} parent=35 // pred_check
          %p365 = pneg %p146
        $region38: #{tpu_custom_call.1} parent=35 // pred_check_branch
          %367 = sbr.rel (%p365) target = $region40
        $region39: #{tpu_custom_call.1} parent=35 // pred_region
          %s369 = ssub.s32 128, 128
          %370 = vsyncadd %s356, %s369
          %s371 = sadd.s32 %s28, %s27
          %s372 = smul.addr %s371, 128
          %s373 = scalar_lea.hbm %s4, %s372
          %s375 = sshll.u32 %s359, 4
          %s376 = int_to_ptr.vmem [resolvable:$true] %s375
          %378 = dma.vmem_to_hbm [thread:$0]  %s376, 128, %s373, %s356
        $region40: #{tpu_custom_call.1} parent=35 // pred_fallthru
          _
        // Predicated region
        $region41: #{tpu_custom_call.1} parent=35 // pred_check
          %p379 = pneg %p174
        $region42: #{tpu_custom_call.1} parent=35 // pred_check_branch
          %381 = sbr.rel (%p379) target = $region44
        $region43: #{tpu_custom_call.1} parent=35 // pred_region
          %s383 = ssub.s32 64, 64
          %384 = vsyncadd %s361, %s383
          %s385 = sadd.s32 %s28, %s27
          %s386 = smul.addr %s385, 64
          %s387 = scalar_lea.hbm %s5, %s386
          %s389 = sshll.u32 %s364, 4
          %s390 = int_to_ptr.vmem [resolvable:$true] %s389
          %392 = dma.vmem_to_hbm [thread:$0]  %s390, 64, %s387, %s361
        $region44: #{tpu_custom_call.1} parent=35 // pred_fallthru
          _
      $region36: #{tpu_custom_call.1} parent=5 // pred_fallthru
        _
      %p393 = scmp.le.s32.totalorder 2, %s18
      // Predicated region
      $region45: #{tpu_custom_call.1} parent=5 // pred_check
        %p394 = pneg %p393
      $region46: #{tpu_custom_call.1} parent=5 // pred_check_branch
        %396 = sbr.rel (%p394) target = $region48
      $region47: #{tpu_custom_call.1} parent=5 // pred_region
        %s397 = ssub.s32 %s18, 2
        // Predicated region
        $region49: #{tpu_custom_call.1} parent=47 // pred_check
          %p398 = pneg %p152
        $region50: #{tpu_custom_call.1} parent=47 // pred_check_branch
          %400 = sbr.rel (%p398) target = $region52
        $region51: #{tpu_custom_call.1} parent=47 // pred_region
          %s401 = sand.u32 %s137, 1
          %s402 = scalar_lea.sflag [#allocation3], %s401
          %s403 = sand.u32 %s137, 1
          %s404 = smul.addr %s403, 8
          %s405 = scalar_lea.vmem [#allocation2], %s404
          %406 = dma.done %s402, 128
        $region52: #{tpu_custom_call.1} parent=47 // pred_fallthru
          _
        // Predicated region
        $region53: #{tpu_custom_call.1} parent=47 // pred_check
          %p407 = pneg %p180
        $region54: #{tpu_custom_call.1} parent=47 // pred_check_branch
          %409 = sbr.rel (%p407) target = $region56
        $region55: #{tpu_custom_call.1} parent=47 // pred_region
          %s410 = sand.u32 %s165, 1
          %s411 = scalar_lea.sflag [#allocation5], %s410
          %s412 = sand.u32 %s165, 1
          %s413 = smul.addr %s412, 4
          %s414 = scalar_lea.vmem [#allocation4], %s413
          %415 = dma.done %s411, 64
        $region56: #{tpu_custom_call.1} parent=47 // pred_fallthru
          _
      $region48: #{tpu_custom_call.1} parent=5 // pred_fallthru
        _
    $region6: #{tpu_custom_call.1} parent=1 // loop_footer
      %s22 = sadd.s32 1, %s18
    $region7: #{tpu_custom_call.1} parent=1 // loop_footer_branch
      %17 = sbr.rel target = $region3
    $region8: #{tpu_custom_call.1} parent=1 // loop_exit
      _
    %416 = vsyncpa [#allocation3], 1
    %s417 = scalar_lea.sflag [#allocation3], 1
    %418 = vsyncpa %s417, 1
    %419 = vsyncpa [#allocation5], 1
    %s420 = scalar_lea.sflag [#allocation5], 1
    %421 = vsyncpa %s420, 1

</llo_original>
